<compile_context>
chip_gen: v6e
topology: v6e:2x2x1
jax: 0.10.0
libtpu: 0.0.40
codegen_flags: <defaults>
</compile_context>

<pallas_src>
import functools
import math

import jax
import jax.numpy as jnp
import numpy as np
from jax.experimental import pallas as pl
from jax.experimental.pallas import tpu as pltpu


# ------------------------- Fused Q/K/V projection kernel -------------------- #
def _qkv_proj_kernel(q_ref, k_ref, v_ref, wq_ref, wk_ref, wv_ref,
                     bq_ref, bk_ref, bv_ref, qo_ref, ko_ref, vo_ref):
    # One launch projects q, k and v row tiles. bf16 MXU inputs, f32 accumulate,
    # bf16 outputs (halves HBM traffic into the attention kernel). Three
    # separate lane-dense stores - no concatenate temporary.
    qo_ref[...] = (jnp.dot(q_ref[...].astype(jnp.bfloat16), wq_ref[...],
                           preferred_element_type=jnp.float32)
                   + bq_ref[...]).astype(qo_ref.dtype)
    ko_ref[...] = (jnp.dot(k_ref[...].astype(jnp.bfloat16), wk_ref[...],
                           preferred_element_type=jnp.float32)
                   + bk_ref[...]).astype(ko_ref.dtype)
    vo_ref[...] = (jnp.dot(v_ref[...].astype(jnp.bfloat16), wv_ref[...],
                           preferred_element_type=jnp.float32)
                   + bv_ref[...]).astype(vo_ref.dtype)


# ------------------------------ Attention kernel ---------------------------- #
def _attention_kernel(q_ref, k_ref, v_ref, mask_ref, matx_ref,
                      wa_exp_ref, wb_ref, bfused_ref, mbase_ref,
                      wo_t_ref, bo_ref, out_ref, attn_ref, *, binary_mask=True):
    # q_ref    : [1, tq, d_model] bf16   projected queries for this tile
    # k_ref    : [1, S,  d_model] bf16   projected keys (per-batch block)
    # v_ref    : [1, S,  d_model] bf16   projected values (per-batch block)
    # mask_ref : [1, tq, S] f32          0/1 mask (broadcast over heads)
    # matx_ref : [1, h, tq, S] f32
    # wa_exp   : [h, d_model] bf16 VMEM  Wa[o, head(d)] / sqrt(d_k)
    # wb       : [h, h] f32 SMEM         folded conv, matx half
    # bfused   : [h]   f32 SMEM          folded conv bias
    # mbase    : [h]   f32 SMEM          -1e9 * sum_c Wa[o, c] (masked value)
    # wo_t     : [d_model, d_model] bf16 output projection W^T
    # bo       : [1, d_model] f32
    # out_ref  : [1, tq, d_model] f32    FINAL output (projection fused here)
    # attn_ref : [1, h, tq, S] f32       pre-softmax conv output (self.attn)
    h = matx_ref.shape[1]
    d_model = q_ref.shape[2]
    d_k = d_model // h

    q_tile = q_ref[0]                      # [tq, d_model] bf16
    k_all = k_ref[0]                       # [S,  d_model] bf16
    v_all = v_ref[0]                       # [S,  d_model] bf16
    wa_all = wa_exp_ref[...]               # [h, d_model]  bf16
    mask = mask_ref[0]                     # [tq, S] f32
    is_masked = mask == 0.0

    outs = []
    for o in range(h):
        # --- Wa folded into QK^T: one d_model-deep MXU contraction/head ---
        qt = q_tile * wa_all[o:o + 1, :]                            # bf16
        raw = jax.lax.dot_general(qt, k_all, (((1,), (1,)), ((), ())),
                                  preferred_element_type=jnp.float32)  # [tq,S]
        if binary_mask:
            mix = jnp.where(is_masked, mbase_ref[o], raw)
        else:
            # exact module semantics for non-0/1 masks (mask is head-shared,
            # so the multiply commutes with the Wa fold)
            mix = jnp.where(is_masked, mbase_ref[o], raw * mask)

        # --- Wb @ matx mix: single live [tq, S] accumulator per head ---
        for c in range(h):
            mix = mix + matx_ref[0, c] * wb_ref[o, c]
        mix = mix + bfused_ref[o]
        attn_ref[0, o] = mix                                        # self.attn

        # --- softmax over keys (dropout = identity in eval mode) ---
        mx = jnp.max(mix, axis=-1, keepdims=True)
        e = jnp.exp(mix - mx)
        p = e * pl.reciprocal(jnp.sum(e, axis=-1, keepdims=True), approx=True)
        v_head = v_all[:, o * d_k:(o + 1) * d_k]                    # [S, d_k]
        outs.append(jnp.dot(p.astype(jnp.bfloat16), v_head,
                            preferred_element_type=jnp.float32))    # [tq, d_k]

    # --- fused output projection: x @ Wo^T + bo, lane-dense final store ---
    x = jnp.concatenate(outs, axis=-1).astype(jnp.bfloat16)         # [tq, d_model]
    out_ref[0] = (jnp.dot(x, wo_t_ref[...], preferred_element_type=jnp.float32)
                  + bo_ref[...]).astype(out_ref.dtype)


# ----------------------------- Parameter prep ------------------------------- #
def prepare_params(params):
    """One-time host-side preparation (transposes, bf16 casts, conv fold)."""
    h = params['h']
    (wq, bq), (wk, bk), (wv, bv), (wo, bo) = params['liners']
    (w1, b1), (w2, b2), (w3, b3) = params['conv']
    d_model = wq.shape[0]
    d_k = d_model // h

    # Fold the 1x1-conv stack (exact algebra: no nonlinearity between convs):
    #   y = W3@(W2@(W1@cat(scores,matx)+b1)+b2)+b3 = Wa@scores + Wb@matx + b_f
    w_fused = w3 @ (w2 @ w1)                        # [h, 2h]
    b_fused = w3 @ (w2 @ b1 + b2) + b3              # [h]
    w_a, w_b = w_fused[:, :h], w_fused[:, h:]       # [h, h] each
    scale = jnp.float32(1.0 / math.sqrt(d_k))

    return {
        'h': h, 'd_model': d_model, 'd_k': d_k,
        'wq_t': wq.T.astype(jnp.bfloat16),
        'wk_t': wk.T.astype(jnp.bfloat16),
        'wv_t': wv.T.astype(jnp.bfloat16),
        'wo_t': wo.T.astype(jnp.bfloat16),
        'bq': bq.reshape(1, d_model), 'bk': bk.reshape(1, d_model),
        'bv': bv.reshape(1, d_model), 'bo': bo.reshape(1, d_model),
        # Wa[o,c]/sqrt(d_k) expanded along the d_k columns of head c.
        'wa_exp': jnp.repeat(w_a * scale, d_k, axis=1).astype(jnp.bfloat16),
        'wb': w_b.astype(jnp.float32),                              # SMEM
        'b_fused': b_fused.astype(jnp.float32),                     # SMEM
        'masked_base': (jnp.float32(-1000000000.0)
                        * jnp.sum(w_a, axis=1)).astype(jnp.float32),  # SMEM
    }


def _vmem_budget_bytes():
    try:
        kind = jax.devices()[0].device_kind.lower()
    except Exception:
        kind = ""
    if "v5" in kind or "v6" in kind:
        return 96 * 1024 * 1024      # 128 MiB physical VMEM
    return 56 * 1024 * 1024          # v7x-class: 64 MiB per TensorCore


def _pick_query_tile(S, h, d_model, budget_bytes):
    cands = [t for t in (512, 256, 128, 64, 32, 16, 8) if S % t == 0] or [S]
    for t in cands:
        per_tile = 2 * (t * d_model * 2          # q block (bf16, x2 buffers)
                        + 2 * S * d_model * 2    # k + v blocks (bf16)
                        + t * S * 4              # mask block (f32)
                        + h * t * S * 4          # matx block (f32)
                        + h * t * S * 4          # attn output block (f32)
                        + t * d_model * 4)       # final output block (f32)
        if per_tile <= budget_bytes:
            return t
    return cands[-1]


# ---------------------------------- Wrapper --------------------------------- #
def multi_headed_attention(prep, query, key, value, mask, matx, *,
                           binary_mask=True):
    """query/key/value: [B,S,d_model] f32; mask: [B,S,S] 0/1 f32; matx: [B,h,S,S]."""
    B, S, d_model = query.shape
    h = prep['h']
    M = B * S
    tm = min(256, M)

    # ---- fused Q/K/V projection: one tiled pallas_call, bf16 outputs ----
    row_spec = pl.BlockSpec((tm, d_model), lambda i: (i, 0))
    w_spec = pl.BlockSpec((d_model, d_model), lambda i: (0, 0))
    b_spec = pl.BlockSpec((1, d_model), lambda i: (0, 0))
    q_p, k_p, v_p = pl.pallas_call(
        _qkv_proj_kernel,
        out_shape=tuple(jax.ShapeDtypeStruct((M, d_model), jnp.bfloat16)
                        for _ in range(3)),
        grid=(pl.cdiv(M, tm),),
        in_specs=[row_spec, row_spec, row_spec, w_spec, w_spec, w_spec,
                  b_spec, b_spec, b_spec],
        out_specs=(row_spec, row_spec, row_spec),
        compiler_params=pltpu.CompilerParams(dimension_semantics=("parallel",)),
    )(query.reshape(M, d_model), key.reshape(M, d_model),
      value.reshape(M, d_model),
      prep['wq_t'], prep['wk_t'], prep['wv_t'],
      prep['bq'], prep['bk'], prep['bv'])
    q_p = q_p.reshape(B, S, d_model)
    k_p = k_p.reshape(B, S, d_model)
    v_p = v_p.reshape(B, S, d_model)

    # ---- attention + fused output projection: grid over (batch, q tiles) ----
    budget = _vmem_budget_bytes()
    tq = _pick_query_tile(S, h, d_model, budget)
    n_q = pl.cdiv(S, tq)
    kernel = functools.partial(_attention_kernel, binary_mask=binary_mask)
    smem = pl.BlockSpec(memory_space=pltpu.MemorySpace.SMEM)

    out, attn = pl.pallas_call(
        kernel,
        out_shape=(jax.ShapeDtypeStruct((B, S, d_model), jnp.float32),
                   jax.ShapeDtypeStruct((B, h, S, S), jnp.float32)),
        grid=(B, n_q),
        in_specs=[
            pl.BlockSpec((1, tq, d_model), lambda b, qi: (b, qi, 0)),   # q
            pl.BlockSpec((1, S, d_model), lambda b, qi: (b, 0, 0)),     # k
            pl.BlockSpec((1, S, d_model), lambda b, qi: (b, 0, 0)),     # v
            pl.BlockSpec((1, tq, S), lambda b, qi: (b, qi, 0)),         # mask
            pl.BlockSpec((1, h, tq, S), lambda b, qi: (b, 0, qi, 0)),   # matx
            pl.BlockSpec((h, d_model), lambda b, qi: (0, 0)),           # wa_exp
            smem,                                                       # wb
            smem,                                                       # b_fused
            smem,                                                       # masked_base
            pl.BlockSpec((d_model, d_model), lambda b, qi: (0, 0)),     # wo_t
            pl.BlockSpec((1, d_model), lambda b, qi: (0, 0)),           # bo
        ],
        out_specs=(pl.BlockSpec((1, tq, d_model), lambda b, qi: (b, qi, 0)),
                   pl.BlockSpec((1, h, tq, S), lambda b, qi: (b, 0, qi, 0))),
        compiler_params=pltpu.CompilerParams(
            dimension_semantics=("parallel", "parallel"),
            vmem_limit_bytes=budget),
    )(q_p, k_p, v_p, mask, matx,
      prep['wa_exp'], prep['wb'], prep['b_fused'], prep['masked_base'],
      prep['wo_t'], prep['bo'])
    return out, attn


# ----------------------------- Pure-JAX reference --------------------------- #
def reference(params, query, key, value, mask, matx):
    B, S, d_model = query.shape
    h = params['h']
    d_k = d_model // h

    def lin(x, wb_):
        w, b = wb_
        return x @ w.T + b

    q = lin(query, params['liners'][0]).reshape(B, S, h, d_k).transpose(0, 2, 1, 3)
    k = lin(key, params['liners'][1]).reshape(B, S, h, d_k).transpose(0, 2, 1, 3)
    v = lin(value, params['liners'][2]).reshape(B, S, h, d_k).transpose(0, 2, 1, 3)
    scores = jnp.einsum('bhqd,bhkd->bhqk', q, k) / math.sqrt(d_k)
    m = mask[:, None, :, :]
    scores = jnp.where(m == 0.0, -1000000000.0, scores * m)
    cat = jnp.concatenate([scores, matx], axis=1)

    def conv1x1(x, wb_):
        w, b = wb_
        return jnp.einsum('oc,bcij->boij', w, x) + b[None, :, None, None]

    y = conv1x1(conv1x1(conv1x1(cat, params['conv'][0]),
                        params['conv'][1]), params['conv'][2])
    p = jax.nn.softmax(y, axis=-1)
    x = jnp.einsum('bhqk,bhkd->bhqd', p, v)
    x = x.transpose(0, 2, 1, 3).reshape(B, S, d_model)
    return lin(x, params['liners'][3]), y


# ------------------------------------ main ---------------------------------- #
if __name__ == "__main__":
    B, S, h, d_k = 2, 8, 4, 8
    d_model = h * d_k

    keys = jax.random.split(jax.random.PRNGKey(0), 18)

    def wb(kw, kb, out_d, in_d, scale=0.1, positive=False):
        w = scale * jax.random.normal(kw, (out_d, in_d), jnp.float32)
        if positive:
            # Positive conv weights keep the -1e9 mask sentinel strongly
            # negative after the channel mix, so the numerical comparison is
            # not dominated by fp reassociation noise on huge-magnitude logits.
            w = jnp.abs(w)
        b = scale * jax.random.normal(kb, (out_d,), jnp.float32)
        return w, b

    params = {
        'h': h,
        'liners': [wb(keys[2 * i], keys[2 * i + 1], d_model, d_model)
                   for i in range(4)],
        'conv': [wb(keys[8], keys[9], 2 * h, 2 * h, positive=True),
                 wb(keys[10], keys[11], h, 2 * h, positive=True),
                 wb(keys[12], keys[13], h, h, positive=True)],
    }
    prep = prepare_params(params)

    q_in = jax.random.normal(keys[14], (B, S, d_model), jnp.float32)
    k_in = jax.random.normal(keys[15], (B, S, d_model), jnp.float32)
    v_in = jax.random.normal(keys[16], (B, S, d_model), jnp.float32)
    # float 0/1 mask (causal), broadcast over heads like torch's unsqueeze(1)
    mask = jnp.broadcast_to(jnp.tril(jnp.ones((S, S), jnp.float32)), (B, S, S))
    matx = 0.1 * jax.random.normal(keys[17], (B, h, S, S), jnp.float32)

    out, attn = multi_headed_attention(prep, q_in, k_in, v_in, mask, matx)
    out = jax.block_until_ready(out)
    attn = jax.block_until_ready(attn)

    ref_out, ref_attn = reference(params, q_in, k_in, v_in, mask, matx)
    # Kernel uses bf16 MXU inputs / bf16 QKV storage with f32 accumulation.
    assert np.allclose(np.asarray(out), np.asarray(ref_out), rtol=2e-2, atol=2e-2)
    assert np.allclose(np.asarray(attn), np.asarray(ref_attn), rtol=2e-2, atol=2e-2)

    print("KERNEL_OK")
</pallas_src>

<mosaic_0001>
module attributes {stable_mosaic.version = 11 : i64} {
  func.func @_qkv_proj_kernel(%arg0: i32, %arg1: memref<16x32xf32, #tpu.memory_space<vmem>>, %arg2: memref<16x32xf32, #tpu.memory_space<vmem>>, %arg3: memref<16x32xf32, #tpu.memory_space<vmem>>, %arg4: memref<32x32xbf16, #tpu.memory_space<vmem>>, %arg5: memref<32x32xbf16, #tpu.memory_space<vmem>>, %arg6: memref<32x32xbf16, #tpu.memory_space<vmem>>, %arg7: memref<1x32xf32, #tpu.memory_space<vmem>>, %arg8: memref<1x32xf32, #tpu.memory_space<vmem>>, %arg9: memref<1x32xf32, #tpu.memory_space<vmem>>, %arg10: memref<16x32xbf16, #tpu.memory_space<vmem>>, %arg11: memref<16x32xbf16, #tpu.memory_space<vmem>>, %arg12: memref<16x32xbf16, #tpu.memory_space<vmem>>) attributes {dimension_semantics = [#tpu.dimension_semantics<parallel>], iteration_bounds = array<i64: 1>, scalar_prefetch = 0 : i64, scratch_operands = 0 : i64, tpu.core_type = #tpu.core_type<tc>, window_params = [{transform_indices = @transform_0, window_bounds = array<i64: 16, 32>}, {transform_indices = @transform_1, window_bounds = array<i64: 16, 32>}, {transform_indices = @transform_2, window_bounds = array<i64: 16, 32>}, {pipeline_mode = #tpu.pipeline_mode<synchronous>, transform_indices = @transform_3, window_bounds = array<i64: 32, 32>}, {pipeline_mode = #tpu.pipeline_mode<synchronous>, transform_indices = @transform_4, window_bounds = array<i64: 32, 32>}, {pipeline_mode = #tpu.pipeline_mode<synchronous>, transform_indices = @transform_5, window_bounds = array<i64: 32, 32>}, {pipeline_mode = #tpu.pipeline_mode<synchronous>, transform_indices = @transform_6, window_bounds = array<i64: 1, 32>}, {pipeline_mode = #tpu.pipeline_mode<synchronous>, transform_indices = @transform_7, window_bounds = array<i64: 1, 32>}, {pipeline_mode = #tpu.pipeline_mode<synchronous>, transform_indices = @transform_8, window_bounds = array<i64: 1, 32>}, {transform_indices = @transform_9, window_bounds = array<i64: 16, 32>}, {transform_indices = @transform_10, window_bounds = array<i64: 16, 32>}, {transform_indices = @transform_11, window_bounds = array<i64: 16, 32>}]} {
    %c0 = arith.constant 0 : index
    %c0_0 = arith.constant 0 : index
    %0 = vector.load %arg1[%c0, %c0_0] : memref<16x32xf32, #tpu.memory_space<vmem>>, vector<16x32xf32>
    %1 = arith.truncf %0 : vector<16x32xf32> to vector<16x32xbf16>
    %c0_1 = arith.constant 0 : index
    %c0_2 = arith.constant 0 : index
    %2 = vector.load %arg4[%c0_1, %c0_2] : memref<32x32xbf16, #tpu.memory_space<vmem>>, vector<32x32xbf16>
    %cst = arith.constant dense<0.000000e+00> : vector<16x32xf32>
    %3 = tpu.matmul %1, %2, %cst {dimension_numbers = #tpu.dot_dimension_numbers<[1], [0], [0], [1], [0, 0, 1, 1], [], []>} : vector<16x32xbf16>, vector<32x32xbf16>, vector<16x32xf32> -> vector<16x32xf32>
    %c0_3 = arith.constant 0 : index
    %c0_4 = arith.constant 0 : index
    %4 = vector.load %arg7[%c0_3, %c0_4] : memref<1x32xf32, #tpu.memory_space<vmem>>, vector<1x32xf32>
    %5 = vector.broadcast %4 : vector<1x32xf32> to vector<16x32xf32>
    %6 = arith.addf %3, %5 : vector<16x32xf32>
    %7 = arith.truncf %6 : vector<16x32xf32> to vector<16x32xbf16>
    %c0_5 = arith.constant 0 : index
    %c0_6 = arith.constant 0 : index
    %8 = vector.load %arg10[%c0_5, %c0_6] : memref<16x32xbf16, #tpu.memory_space<vmem>>, vector<16x32xbf16>
    tpu.vector_store %arg10[%c0_5, %c0_6], %7 {strides = array<i32>} : memref<16x32xbf16, #tpu.memory_space<vmem>>, vector<16x32xbf16>,
    %c0_7 = arith.constant 0 : index
    %c0_8 = arith.constant 0 : index
    %9 = vector.load %arg2[%c0_7, %c0_8] : memref<16x32xf32, #tpu.memory_space<vmem>>, vector<16x32xf32>
    %10 = arith.truncf %9 : vector<16x32xf32> to vector<16x32xbf16>
    %c0_9 = arith.constant 0 : index
    %c0_10 = arith.constant 0 : index
    %11 = vector.load %arg5[%c0_9, %c0_10] : memref<32x32xbf16, #tpu.memory_space<vmem>>, vector<32x32xbf16>
    %cst_11 = arith.constant dense<0.000000e+00> : vector<16x32xf32>
    %12 = tpu.matmul %10, %11, %cst_11 {dimension_numbers = #tpu.dot_dimension_numbers<[1], [0], [0], [1], [0, 0, 1, 1], [], []>} : vector<16x32xbf16>, vector<32x32xbf16>, vector<16x32xf32> -> vector<16x32xf32>
    %c0_12 = arith.constant 0 : index
    %c0_13 = arith.constant 0 : index
    %13 = vector.load %arg8[%c0_12, %c0_13] : memref<1x32xf32, #tpu.memory_space<vmem>>, vector<1x32xf32>
    %14 = vector.broadcast %13 : vector<1x32xf32> to vector<16x32xf32>
    %15 = arith.addf %12, %14 : vector<16x32xf32>
    %16 = arith.truncf %15 : vector<16x32xf32> to vector<16x32xbf16>
    %c0_14 = arith.constant 0 : index
    %c0_15 = arith.constant 0 : index
    %17 = vector.load %arg11[%c0_14, %c0_15] : memref<16x32xbf16, #tpu.memory_space<vmem>>, vector<16x32xbf16>
    tpu.vector_store %arg11[%c0_14, %c0_15], %16 {strides = array<i32>} : memref<16x32xbf16, #tpu.memory_space<vmem>>, vector<16x32xbf16>,
    %c0_16 = arith.constant 0 : index
    %c0_17 = arith.constant 0 : index
    %18 = vector.load %arg3[%c0_16, %c0_17] : memref<16x32xf32, #tpu.memory_space<vmem>>, vector<16x32xf32>
    %19 = arith.truncf %18 : vector<16x32xf32> to vector<16x32xbf16>
    %c0_18 = arith.constant 0 : index
    %c0_19 = arith.constant 0 : index
    %20 = vector.load %arg6[%c0_18, %c0_19] : memref<32x32xbf16, #tpu.memory_space<vmem>>, vector<32x32xbf16>
    %cst_20 = arith.constant dense<0.000000e+00> : vector<16x32xf32>
    %21 = tpu.matmul %19, %20, %cst_20 {dimension_numbers = #tpu.dot_dimension_numbers<[1], [0], [0], [1], [0, 0, 1, 1], [], []>} : vector<16x32xbf16>, vector<32x32xbf16>, vector<16x32xf32> -> vector<16x32xf32>
    %c0_21 = arith.constant 0 : index
    %c0_22 = arith.constant 0 : index
    %22 = vector.load %arg9[%c0_21, %c0_22] : memref<1x32xf32, #tpu.memory_space<vmem>>, vector<1x32xf32>
    %23 = vector.broadcast %22 : vector<1x32xf32> to vector<16x32xf32>
    %24 = arith.addf %21, %23 : vector<16x32xf32>
    %25 = arith.truncf %24 : vector<16x32xf32> to vector<16x32xbf16>
    %c0_23 = arith.constant 0 : index
    %c0_24 = arith.constant 0 : index
    %26 = vector.load %arg12[%c0_23, %c0_24] : memref<16x32xbf16, #tpu.memory_space<vmem>>, vector<16x32xbf16>
    tpu.vector_store %arg12[%c0_23, %c0_24], %25 {strides = array<i32>} : memref<16x32xbf16, #tpu.memory_space<vmem>>, vector<16x32xbf16>,
    return
  }
  func.func @transform_0(%arg0: i32) -> (i32, i32) {
    %c0_i32 = arith.constant 0 : i32
    %c0_i32_0 = arith.constant 0 : i32
    return %arg0, %c0_i32 : i32, i32
  }
  func.func @transform_1(%arg0: i32) -> (i32, i32) {
    %c0_i32 = arith.constant 0 : i32
    %c0_i32_0 = arith.constant 0 : i32
    return %arg0, %c0_i32 : i32, i32
  }
  func.func @transform_2(%arg0: i32) -> (i32, i32) {
    %c0_i32 = arith.constant 0 : i32
    %c0_i32_0 = arith.constant 0 : i32
    return %arg0, %c0_i32 : i32, i32
  }
  func.func @transform_3(%arg0: i32) -> (i32, i32) {
    %c0_i32 = arith.constant 0 : i32
    %c0_i32_0 = arith.constant 0 : i32
    %c0_i32_1 = arith.constant 0 : i32
    return %c0_i32, %c0_i32_0 : i32, i32
  }
  func.func @transform_4(%arg0: i32) -> (i32, i32) {
    %c0_i32 = arith.constant 0 : i32
    %c0_i32_0 = arith.constant 0 : i32
    %c0_i32_1 = arith.constant 0 : i32
    return %c0_i32, %c0_i32_0 : i32, i32
  }
  func.func @transform_5(%arg0: i32) -> (i32, i32) {
    %c0_i32 = arith.constant 0 : i32
    %c0_i32_0 = arith.constant 0 : i32
    %c0_i32_1 = arith.constant 0 : i32
    return %c0_i32, %c0_i32_0 : i32, i32
  }
  func.func @transform_6(%arg0: i32) -> (i32, i32) {
    %c0_i32 = arith.constant 0 : i32
    %c0_i32_0 = arith.constant 0 : i32
    %c0_i32_1 = arith.constant 0 : i32
    return %c0_i32, %c0_i32_0 : i32, i32
  }
  func.func @transform_7(%arg0: i32) -> (i32, i32) {
    %c0_i32 = arith.constant 0 : i32
    %c0_i32_0 = arith.constant 0 : i32
    %c0_i32_1 = arith.constant 0 : i32
    return %c0_i32, %c0_i32_0 : i32, i32
  }
  func.func @transform_8(%arg0: i32) -> (i32, i32) {
    %c0_i32 = arith.constant 0 : i32
    %c0_i32_0 = arith.constant 0 : i32
    %c0_i32_1 = arith.constant 0 : i32
    return %c0_i32, %c0_i32_0 : i32, i32
  }
  func.func @transform_9(%arg0: i32) -> (i32, i32) {
    %c0_i32 = arith.constant 0 : i32
    %c0_i32_0 = arith.constant 0 : i32
    return %arg0, %c0_i32 : i32, i32
  }
  func.func @transform_10(%arg0: i32) -> (i32, i32) {
    %c0_i32 = arith.constant 0 : i32
    %c0_i32_0 = arith.constant 0 : i32
    return %arg0, %c0_i32 : i32, i32
  }
  func.func @transform_11(%arg0: i32) -> (i32, i32) {
    %c0_i32 = arith.constant 0 : i32
    %c0_i32_0 = arith.constant 0 : i32
    return %arg0, %c0_i32 : i32, i32
  }
}

</mosaic_0001>

<llo_original>
// kernel: tpu_custom_call.1
$region0: #{tpu_custom_call.1}
  #allocation0 [shape = 'u32[]', space=smem, size = 0x4, offset = 0x4, fixed_abs, tag = 'smem constant byte address 0x4 - core index']
  #allocation1 [shape = 'u32[144,128]{1,0:T(1,128)}', space=vmem, size = 0x12000, scoped, tag = 'internal scratch']
  %s0 = inlined_call_operand.hbm [shape: f32[16,32], index: 0, kind: input, shape index: {}]
  %s1 = inlined_call_operand.hbm [shape: f32[16,32], index: 1, kind: input, shape index: {}]
  %s2 = inlined_call_operand.hbm [shape: f32[16,32], index: 2, kind: input, shape index: {}]
  %s3 = inlined_call_operand.hbm [shape: bf16[32,32], index: 3, kind: input, shape index: {}]
  %s4 = inlined_call_operand.hbm [shape: bf16[32,32], index: 4, kind: input, shape index: {}]
  %s5 = inlined_call_operand.hbm [shape: bf16[32,32], index: 5, kind: input, shape index: {}]
  %s6 = inlined_call_operand.vmem [shape: f32[1,32], index: 6, kind: input, shape index: {}]
  %s7 = inlined_call_operand.vmem [shape: f32[1,32], index: 7, kind: input, shape index: {}]
  %s8 = inlined_call_operand.vmem [shape: f32[1,32], index: 8, kind: input, shape index: {}]
  %s9 = inlined_call_operand.hbm [shape: bf16[16,32], index: 9, kind: output, shape index: {0}]
  %s10 = inlined_call_operand.hbm [shape: bf16[16,32], index: 10, kind: output, shape index: {1}]
  %s11 = inlined_call_operand.hbm [shape: bf16[16,32], index: 11, kind: output, shape index: {2}]
  %12 = xla_tuple %s9, %s10, %s11
  %s13 = sld [smem:[#allocation0]]
  $region86: #{tpu_custom_call.1} parent=0
    _
  %s15 = ssub.s32 1, %s13
  %s16 = scalar_select 0, %s15, %s13
  $region1: #{tpu_custom_call.1} parent=0
    #allocation2 [shape = 'u8[8192]{0}', space=vmem, size = 0x2000, scoped, tag = 'input window, operand 0, single buffered']
    #allocation3 [shape = 's32[1]{0}', space=sflag, size = 0x4, scoped, tag = 'scoped memory for tpu_custom_call.1']
    #allocation4 [shape = 's32[1]{0}', space=sflag, size = 0x4, scoped, tag = 'scoped memory for tpu_custom_call.1']
    #allocation5 [shape = 'u8[8192]{0}', space=vmem, size = 0x2000, scoped, tag = 'input window, operand 1, single buffered']
    #allocation6 [shape = 's32[1]{0}', space=sflag, size = 0x4, scoped, tag = 'scoped memory for tpu_custom_call.1']
    #allocation7 [shape = 'u8[8192]{0}', space=vmem, size = 0x2000, scoped, tag = 'input window, operand 2, single buffered']
    #allocation8 [shape = 'u8[8192]{0}', space=vmem, size = 0x2000, scoped, tag = 'input window, operand 3, single buffered']
    #allocation9 [shape = 's32[1]{0}', space=sflag, size = 0x4, scoped, tag = 'scoped memory for tpu_custom_call.1']
    #allocation10 [shape = 'u8[8192]{0}', space=vmem, size = 0x2000, scoped, tag = 'input window, operand 4, single buffered']
    #allocation11 [shape = 'u8[8192]{0}', space=vmem, size = 0x2000, scoped, tag = 'input window, operand 5, single buffered']
    #allocation12 [shape = 's32[1]{0}', space=sflag, size = 0x4, scoped, tag = 'scoped memory for tpu_custom_call.1']
    #allocation13 [shape = 'u8[4096]{0}', space=vmem, size = 0x1000, scoped, tag = 'output window, operand 0, single buffered']
    #allocation14 [shape = 'u8[4096]{0}', space=vmem, size = 0x1000, scoped, tag = 'output window, operand 1, single buffered']
    #allocation15 [shape = 's32[1]{0}', space=sflag, size = 0x4, scoped, tag = 'scoped memory for tpu_custom_call.1']
    #allocation16 [shape = 'u8[4096]{0}', space=vmem, size = 0x1000, scoped, tag = 'output window, operand 2, single buffered']
    %17 = vsyncpa [#allocation3], 0
    %18 = vsyncpa [#allocation6], 0
    %19 = vsyncpa [#allocation9], 0
    %20 = vsyncpa [#allocation12], 0
    %21 = vsyncpa [#allocation4], 0
    %22 = vsyncpa [#allocation15], 0
    // Predicated region
    $region2: #{tpu_custom_call.1} parent=1 // pred_check
      _
    $region3: #{tpu_custom_call.1} parent=1 // pred_check_branch
      %24 = sbr.rel (0) target = $region5
    $region4: #{tpu_custom_call.1} parent=1 // pred_region
      %s26 = ssub.s32 256, 256
      %27 = vsyncadd [#allocation3], %s26
      %s28 = sshll.u32 [#allocation2], 4
      %s29 = int_to_ptr.vmem [resolvable:$true] %s28
      %34 = dma.hbm_to_vmem [thread:$0]  %s0, 256, %s29, [#allocation3], 128, 128, 8
    $region5: #{tpu_custom_call.1} parent=1 // pred_fallthru
      _
    // Predicated region
    $region6: #{tpu_custom_call.1} parent=1 // pred_check
      _
    $region7: #{tpu_custom_call.1} parent=1 // pred_check_branch
      %36 = sbr.rel (0) target = $region9
    $region8: #{tpu_custom_call.1} parent=1 // pred_region
      %s38 = ssub.s32 256, 256
      %39 = vsyncadd [#allocation6], %s38
      %s40 = sshll.u32 [#allocation5], 4
      %s41 = int_to_ptr.vmem [resolvable:$true] %s40
      %46 = dma.hbm_to_vmem [thread:$0]  %s1, 256, %s41, [#allocation6], 128, 128, 8
    $region9: #{tpu_custom_call.1} parent=1 // pred_fallthru
      _
    // Predicated region
    $region10: #{tpu_custom_call.1} parent=1 // pred_check
      _
    $region11: #{tpu_custom_call.1} parent=1 // pred_check_branch
      %48 = sbr.rel (0) target = $region13
    $region12: #{tpu_custom_call.1} parent=1 // pred_region
      %s50 = ssub.s32 256, 256
      %51 = vsyncadd [#allocation6], %s50
      %s52 = sshll.u32 [#allocation7], 4
      %s53 = int_to_ptr.vmem [resolvable:$true] %s52
      %58 = dma.hbm_to_vmem [thread:$0]  %s2, 256, %s53, [#allocation6], 128, 128, 8
    $region13: #{tpu_custom_call.1} parent=1 // pred_fallthru
      _
    // Predicated region
    $region14: #{tpu_custom_call.1} parent=1 // pred_check
      _
    $region15: #{tpu_custom_call.1} parent=1 // pred_check_branch
      %60 = sbr.rel (0) target = $region17
    $region16: #{tpu_custom_call.1} parent=1 // pred_region
      %s62 = ssub.s32 256, 256
      %63 = vsyncadd [#allocation9], %s62
      %s64 = sshll.u32 [#allocation8], 4
      %s65 = int_to_ptr.vmem [resolvable:$true] %s64
      %70 = dma.hbm_to_vmem [thread:$0]  %s3, 256, %s65, [#allocation9], 64, 64, 4
    $region17: #{tpu_custom_call.1} parent=1 // pred_fallthru
      _
    // Predicated region
    $region18: #{tpu_custom_call.1} parent=1 // pred_check
      _
    $region19: #{tpu_custom_call.1} parent=1 // pred_check_branch
      %72 = sbr.rel (0) target = $region21
    $region20: #{tpu_custom_call.1} parent=1 // pred_region
      %s74 = ssub.s32 256, 256
      %75 = vsyncadd [#allocation9], %s74
      %s76 = sshll.u32 [#allocation10], 4
      %s77 = int_to_ptr.vmem [resolvable:$true] %s76
      %82 = dma.hbm_to_vmem [thread:$0]  %s4, 256, %s77, [#allocation9], 64, 64, 4
    $region21: #{tpu_custom_call.1} parent=1 // pred_fallthru
      _
    // Predicated region
    $region22: #{tpu_custom_call.1} parent=1 // pred_check
      _
    $region23: #{tpu_custom_call.1} parent=1 // pred_check_branch
      %84 = sbr.rel (0) target = $region25
    $region24: #{tpu_custom_call.1} parent=1 // pred_region
      %s86 = ssub.s32 256, 256
      %87 = vsyncadd [#allocation12], %s86
      %s88 = sshll.u32 [#allocation11], 4
      %s89 = int_to_ptr.vmem [resolvable:$true] %s88
      %94 = dma.hbm_to_vmem [thread:$0]  %s5, 256, %s89, [#allocation12], 64, 64, 4
    $region25: #{tpu_custom_call.1} parent=1 // pred_fallthru
      _
    // Predicated region
    $region26: #{tpu_custom_call.1} parent=1 // pred_check
      _
    $region27: #{tpu_custom_call.1} parent=1 // pred_check_branch
      %96 = sbr.rel (0) target = $region29
    $region28: #{tpu_custom_call.1} parent=1 // pred_region
      _
    $region29: #{tpu_custom_call.1} parent=1 // pred_fallthru
      _
    // Predicated region
    $region30: #{tpu_custom_call.1} parent=1 // pred_check
      _
    $region31: #{tpu_custom_call.1} parent=1 // pred_check_branch
      %98 = sbr.rel (0) target = $region33
    $region32: #{tpu_custom_call.1} parent=1 // pred_region
      _
    $region33: #{tpu_custom_call.1} parent=1 // pred_fallthru
      _
    // Predicated region
    $region34: #{tpu_custom_call.1} parent=1 // pred_check
      _
    $region35: #{tpu_custom_call.1} parent=1 // pred_check_branch
      %100 = sbr.rel (0) target = $region37
    $region36: #{tpu_custom_call.1} parent=1 // pred_region
      _
    $region37: #{tpu_custom_call.1} parent=1 // pred_fallthru
      _
    // Predicated region
    $region38: #{tpu_custom_call.1} parent=1 // pred_check
      _
    $region39: #{tpu_custom_call.1} parent=1 // pred_check_branch
      %102 = sbr.rel (0) target = $region41
    $region40: #{tpu_custom_call.1} parent=1 // pred_region
      %103 = dma.done [#allocation3], 256
    $region41: #{tpu_custom_call.1} parent=1 // pred_fallthru
      _
    // Predicated region
    $region42: #{tpu_custom_call.1} parent=1 // pred_check
      _
    $region43: #{tpu_custom_call.1} parent=1 // pred_check_branch
      %105 = sbr.rel (0) target = $region45
    $region44: #{tpu_custom_call.1} parent=1 // pred_region
      %106 = dma.done [#allocation6], 256
    $region45: #{tpu_custom_call.1} parent=1 // pred_fallthru
      _
    // Predicated region
    $region46: #{tpu_custom_call.1} parent=1 // pred_check
      _
    $region47: #{tpu_custom_call.1} parent=1 // pred_check_branch
      %108 = sbr.rel (0) target = $region49
    $region48: #{tpu_custom_call.1} parent=1 // pred_region
      %109 = dma.done [#allocation6], 256
    $region49: #{tpu_custom_call.1} parent=1 // pred_fallthru
      _
    // Predicated region
    $region50: #{tpu_custom_call.1} parent=1 // pred_check
      _
    $region51: #{tpu_custom_call.1} parent=1 // pred_check_branch
      %111 = sbr.rel (0) target = $region53
    $region52: #{tpu_custom_call.1} parent=1 // pred_region
      %112 = dma.done [#allocation9], 256
    $region53: #{tpu_custom_call.1} parent=1 // pred_fallthru
      _
    // Predicated region
    $region54: #{tpu_custom_call.1} parent=1 // pred_check
      _
    $region55: #{tpu_custom_call.1} parent=1 // pred_check_branch
      %114 = sbr.rel (0) target = $region57
    $region56: #{tpu_custom_call.1} parent=1 // pred_region
      %115 = dma.done [#allocation9], 256
    $region57: #{tpu_custom_call.1} parent=1 // pred_fallthru
      _
    // Predicated region
    $region58: #{tpu_custom_call.1} parent=1 // pred_check
      _
    $region59: #{tpu_custom_call.1} parent=1 // pred_check_branch
      %117 = sbr.rel (0) target = $region61
    $region60: #{tpu_custom_call.1} parent=1 // pred_region
      %118 = dma.done [#allocation12], 256
    $region61: #{tpu_custom_call.1} parent=1 // pred_fallthru
      _
    %v120 = vld [vmem:[#allocation2] sm:$0xff]
    %v121 = vld [vmem:[#allocation2 + $0x8] sm:$0xff]
    %v122 = vpack.c.bf16 %v121, %v120
    %v123 = vld [vmem:[#allocation8] sm:$0xf]
    %v124 = vld [vmem:[#allocation8 + $0x4] sm:$0xf]
    %v125 = vld [vmem:[#allocation8 + $0x8] sm:$0xf]
    %v126 = vld [vmem:[#allocation8 + $0xc] sm:$0xf]
    %v127 = vld [vmem:[%s6] sm:$0x1]
    %v129 = vlaneseq
    %v130 = vshrl.u32 %v129, 7
    %v131 = vsub.s32 0, %v130
    %v132 = vrot.slane %v127, %v131
    %v138 = vunpack.c.l.b16 %v123
    %v139 = vunpack.c.l.b16 %v124
    %v140 = vunpack.c.l.b16 %v125
    %v141 = vunpack.c.l.b16 %v126
    %v142 = vpack.c.b16 %v139, %v138
    %v143 = vpack.c.b16 %v141, %v140
    %vm146 = vcmask 261120
    %v148 = vsel %vm146, %v122, 0
    %150 = vmatprep.subr.bf16.mxu0 0
    %151 = vmatpush1.bf16.msra.mxu0 0
    %152 = vmatprep.subr.bf16.mxu0 0
    %153 = vmatpush1.bf16.msra.mxu0 0
    %154 = vmatprep.subr.bf16.mxu0 0
    %155 = vmatpush1.bf16.msra.mxu0 0
    %156 = vmatprep.subr.bf16.mxu0 0
    %157 = vmatpush1.bf16.msra.mxu0 0
    %158 = vmatprep.subr.bf16.mxu0 0
    %159 = vmatpush1.bf16.msra.mxu0 0
    %160 = vmatprep.subr.bf16.mxu0 0
    %161 = vmatpush1.bf16.msra.mxu0 0
    %162 = vmatprep.subr.bf16.mxu0 0
    %163 = vmatpush1.bf16.msra.mxu0 %v143
    %164 = vmatprep.subr.bf16.mxu0 0
    %165 = vmatpush1.bf16.msra.mxu0 %v142
    %166 = vmatprep.subr.bf16.mxu0 0
    %167 = vmatpush2.bf16.msra.mxu0 0
    %168 = vmatprep.subr.bf16.mxu0 0
    %169 = vmatpush2.bf16.msra.mxu0 0
    %170 = vmatprep.subr.bf16.mxu0 0
    %171 = vmatpush2.bf16.msra.mxu0 0
    %172 = vmatprep.subr.bf16.mxu0 0
    %173 = vmatpush2.bf16.msra.mxu0 0
    %174 = vmatprep.subr.bf16.mxu0 0
    %175 = vmatpush2.bf16.msra.mxu0 0
    %176 = vmatprep.subr.bf16.mxu0 0
    %177 = vmatpush2.bf16.msra.mxu0 0
    %178 = vmatprep.subr.bf16.mxu0 0
    %179 = vmatpush2.bf16.msra.mxu0 0
    %180 = vmatprep.subr.bf16.mxu0 0
    %181 = vmatpush2.bf16.msra.mxu0 0
    %182 = vmatprep.mubr.bf16.mxu0 0
    %183 = vmatmul.mubr.bf16.gmra.mxu0 %v148
    %v184 = vpop.f32.mrf.mxu0
    %v185 = vadd.f32 %v132, %v184
    %v186 = vpop.f32.mrf.mxu0
    %v187 = vpop.f32.mrf.mxu0
    %v188 = vadd.f32 %v132, %v187
    %v189 = vpop.f32.mrf.mxu0
    %190 = vdwg.mxu0
    %v191 = vpack.c.bf16 %v188, %v185
    %v193 = vunpack.c.l.b16 %v191
    %v194 = vunpack.c.h.b16 %v191
    %v195 = vpack.c.b16 %v193, %v193
    %v196 = vpack.c.b16 %v194, %v194
    %vm199 = vcmask 257024
    %200 = vst.msk [vmem:[#allocation13] sm:$0xf] %vm199, %v195
    %201 = vst.msk [vmem:[#allocation13 + $0x4] sm:$0xf] %vm199, %v196
    %v202 = vld [vmem:[#allocation5] sm:$0xff]
    %v203 = vld [vmem:[#allocation5 + $0x8] sm:$0xff]
    %v204 = vpack.c.bf16 %v203, %v202
    %v205 = vld [vmem:[#allocation10] sm:$0xf]
    %v206 = vld [vmem:[#allocation10 + $0x4] sm:$0xf]
    %v207 = vld [vmem:[#allocation10 + $0x8] sm:$0xf]
    %v208 = vld [vmem:[#allocation10 + $0xc] sm:$0xf]
    %v209 = vld [vmem:[%s7] sm:$0x1]
    %v211 = vlaneseq
    %v212 = vshrl.u32 %v211, 7
    %v213 = vsub.s32 0, %v212
    %v214 = vrot.slane %v209, %v213
    %v220 = vunpack.c.l.b16 %v205
    %v221 = vunpack.c.l.b16 %v206
    %v222 = vunpack.c.l.b16 %v207
    %v223 = vunpack.c.l.b16 %v208
    %v224 = vpack.c.b16 %v221, %v220
    %v225 = vpack.c.b16 %v223, %v222
    %v229 = vsel %vm146, %v204, 0
    %231 = vmatprep.subr.bf16.mxu0 0
    %232 = vmatpush1.bf16.msra.mxu0 0
    %233 = vmatprep.subr.bf16.mxu0 0
    %234 = vmatpush1.bf16.msra.mxu0 0
    %235 = vmatprep.subr.bf16.mxu0 0
    %236 = vmatpush1.bf16.msra.mxu0 0
    %237 = vmatprep.subr.bf16.mxu0 0
    %238 = vmatpush1.bf16.msra.mxu0 0
    %239 = vmatprep.subr.bf16.mxu0 0
    %240 = vmatpush1.bf16.msra.mxu0 0
    %241 = vmatprep.subr.bf16.mxu0 0
    %242 = vmatpush1.bf16.msra.mxu0 0
    %243 = vmatprep.subr.bf16.mxu0 0
    %244 = vmatpush1.bf16.msra.mxu0 %v225
    %245 = vmatprep.subr.bf16.mxu0 0
    %246 = vmatpush1.bf16.msra.mxu0 %v224
    %247 = vmatprep.subr.bf16.mxu0 0
    %248 = vmatpush2.bf16.msra.mxu0 0
    %249 = vmatprep.subr.bf16.mxu0 0
    %250 = vmatpush2.bf16.msra.mxu0 0
    %251 = vmatprep.subr.bf16.mxu0 0
    %252 = vmatpush2.bf16.msra.mxu0 0
    %253 = vmatprep.subr.bf16.mxu0 0
    %254 = vmatpush2.bf16.msra.mxu0 0
    %255 = vmatprep.subr.bf16.mxu0 0
    %256 = vmatpush2.bf16.msra.mxu0 0
    %257 = vmatprep.subr.bf16.mxu0 0
    %258 = vmatpush2.bf16.msra.mxu0 0
    %259 = vmatprep.subr.bf16.mxu0 0
    %260 = vmatpush2.bf16.msra.mxu0 0
    %261 = vmatprep.subr.bf16.mxu0 0
    %262 = vmatpush2.bf16.msra.mxu0 0
    %263 = vmatprep.mubr.bf16.mxu0 0
    %264 = vmatmul.mubr.bf16.gmra.mxu0 %v229
    %v265 = vpop.f32.mrf.mxu0
    %v266 = vadd.f32 %v214, %v265
    %v267 = vpop.f32.mrf.mxu0
    %v268 = vpop.f32.mrf.mxu0
    %v269 = vadd.f32 %v214, %v268
    %v270 = vpop.f32.mrf.mxu0
    %271 = vdwg.mxu0
    %v272 = vpack.c.bf16 %v269, %v266
    %v274 = vunpack.c.l.b16 %v272
    %v275 = vunpack.c.h.b16 %v272
    %v276 = vpack.c.b16 %v274, %v274
    %v277 = vpack.c.b16 %v275, %v275
    %280 = vst.msk [vmem:[#allocation14] sm:$0xf] %vm199, %v276
    %281 = vst.msk [vmem:[#allocation14 + $0x4] sm:$0xf] %vm199, %v277
    %v282 = vld [vmem:[#allocation7] sm:$0xff]
    %v283 = vld [vmem:[#allocation7 + $0x8] sm:$0xff]
    %v284 = vpack.c.bf16 %v283, %v282
    %v285 = vld [vmem:[#allocation11] sm:$0xf]
    %v286 = vld [vmem:[#allocation11 + $0x4] sm:$0xf]
    %v287 = vld [vmem:[#allocation11 + $0x8] sm:$0xf]
    %v288 = vld [vmem:[#allocation11 + $0xc] sm:$0xf]
    %v289 = vld [vmem:[%s8] sm:$0x1]
    %v291 = vlaneseq
    %v292 = vshrl.u32 %v291, 7
    %v293 = vsub.s32 0, %v292
    %v294 = vrot.slane %v289, %v293
    %v300 = vunpack.c.l.b16 %v285
    %v301 = vunpack.c.l.b16 %v286
    %v302 = vunpack.c.l.b16 %v287
    %v303 = vunpack.c.l.b16 %v288
    %v304 = vpack.c.b16 %v301, %v300
    %v305 = vpack.c.b16 %v303, %v302
    %v309 = vsel %vm146, %v284, 0
    %311 = vmatprep.subr.bf16.mxu0 0
    %312 = vmatpush1.bf16.msra.mxu0 0
    %313 = vmatprep.subr.bf16.mxu0 0
    %314 = vmatpush1.bf16.msra.mxu0 0
    %315 = vmatprep.subr.bf16.mxu0 0
    %316 = vmatpush1.bf16.msra.mxu0 0
    %317 = vmatprep.subr.bf16.mxu0 0
    %318 = vmatpush1.bf16.msra.mxu0 0
    %319 = vmatprep.subr.bf16.mxu0 0
    %320 = vmatpush1.bf16.msra.mxu0 0
    %321 = vmatprep.subr.bf16.mxu0 0
    %322 = vmatpush1.bf16.msra.mxu0 0
    %323 = vmatprep.subr.bf16.mxu0 0
    %324 = vmatpush1.bf16.msra.mxu0 %v305
    %325 = vmatprep.subr.bf16.mxu0 0
    %326 = vmatpush1.bf16.msra.mxu0 %v304
    %327 = vmatprep.subr.bf16.mxu0 0
    %328 = vmatpush2.bf16.msra.mxu0 0
    %329 = vmatprep.subr.bf16.mxu0 0
    %330 = vmatpush2.bf16.msra.mxu0 0
    %331 = vmatprep.subr.bf16.mxu0 0
    %332 = vmatpush2.bf16.msra.mxu0 0
    %333 = vmatprep.subr.bf16.mxu0 0
    %334 = vmatpush2.bf16.msra.mxu0 0
    %335 = vmatprep.subr.bf16.mxu0 0
    %336 = vmatpush2.bf16.msra.mxu0 0
    %337 = vmatprep.subr.bf16.mxu0 0
    %338 = vmatpush2.bf16.msra.mxu0 0
    %339 = vmatprep.subr.bf16.mxu0 0
    %340 = vmatpush2.bf16.msra.mxu0 0
    %341 = vmatprep.subr.bf16.mxu0 0
    %342 = vmatpush2.bf16.msra.mxu0 0
    %343 = vmatprep.mubr.bf16.mxu0 0
    %344 = vmatmul.mubr.bf16.gmra.mxu0 %v309
    %v345 = vpop.f32.mrf.mxu0
    %v346 = vadd.f32 %v294, %v345
    %v347 = vpop.f32.mrf.mxu0
    %v348 = vpop.f32.mrf.mxu0
    %v349 = vadd.f32 %v294, %v348
    %v350 = vpop.f32.mrf.mxu0
    %351 = vdwg.mxu0
    %v352 = vpack.c.bf16 %v349, %v346
    %v354 = vunpack.c.l.b16 %v352
    %v355 = vunpack.c.h.b16 %v352
    %v356 = vpack.c.b16 %v354, %v354
    %v357 = vpack.c.b16 %v355, %v355
    %360 = vst.msk [vmem:[#allocation16] sm:$0xf] %vm199, %v356
    %361 = vst.msk [vmem:[#allocation16 + $0x4] sm:$0xf] %vm199, %v357
    // Predicated region
    $region62: #{tpu_custom_call.1} parent=1 // pred_check
      _
    $region63: #{tpu_custom_call.1} parent=1 // pred_check_branch
      %363 = sbr.rel (0) target = $region65
    $region64: #{tpu_custom_call.1} parent=1 // pred_region
      %s365 = ssub.s32 128, 128
      %366 = vsyncadd [#allocation4], %s365
      %s367 = sshll.u32 [#allocation13], 4
      %s368 = int_to_ptr.vmem [resolvable:$true] %s367
      %373 = dma.vmem_to_hbm [thread:$0]  %s368, 128, %s9, [#allocation4], 64, 64, 4
    $region65: #{tpu_custom_call.1} parent=1 // pred_fallthru
      _
    // Predicated region
    $region66: #{tpu_custom_call.1} parent=1 // pred_check
      _
    $region67: #{tpu_custom_call.1} parent=1 // pred_check_branch
      %375 = sbr.rel (0) target = $region69
    $region68: #{tpu_custom_call.1} parent=1 // pred_region
      %s377 = ssub.s32 128, 128
      %378 = vsyncadd [#allocation15], %s377
      %s379 = sshll.u32 [#allocation14], 4
      %s380 = int_to_ptr.vmem [resolvable:$true] %s379
      %385 = dma.vmem_to_hbm [thread:$0]  %s380, 128, %s10, [#allocation15], 64, 64, 4
    $region69: #{tpu_custom_call.1} parent=1 // pred_fallthru
      _
    // Predicated region
    $region70: #{tpu_custom_call.1} parent=1 // pred_check
      _
    $region71: #{tpu_custom_call.1} parent=1 // pred_check_branch
      %387 = sbr.rel (0) target = $region73
    $region72: #{tpu_custom_call.1} parent=1 // pred_region
      %s389 = ssub.s32 128, 128
      %390 = vsyncadd [#allocation15], %s389
      %s391 = sshll.u32 [#allocation16], 4
      %s392 = int_to_ptr.vmem [resolvable:$true] %s391
      %397 = dma.vmem_to_hbm [thread:$0]  %s392, 128, %s11, [#allocation15], 64, 64, 4
    $region73: #{tpu_custom_call.1} parent=1 // pred_fallthru
      _
    // Predicated region
    $region74: #{tpu_custom_call.1} parent=1 // pred_check
      _
    $region75: #{tpu_custom_call.1} parent=1 // pred_check_branch
      %399 = sbr.rel (0) target = $region77
    $region76: #{tpu_custom_call.1} parent=1 // pred_region
      %400 = dma.done [#allocation4], 128
    $region77: #{tpu_custom_call.1} parent=1 // pred_fallthru
      _
    // Predicated region
    $region78: #{tpu_custom_call.1} parent=1 // pred_check
      _
    $region79: #{tpu_custom_call.1} parent=1 // pred_check_branch
      %402 = sbr.rel (0) target = $region81
    $region80: #{tpu_custom_call.1} parent=1 // pred_region
      %403 = dma.done [#allocation15], 128
    $region81: #{tpu_custom_call.1} parent=1 // pred_fallthru
      _
    // Predicated region
    $region82: #{tpu_custom_call.1} parent=1 // pred_check
      _
    $region83: #{tpu_custom_call.1} parent=1 // pred_check_branch
      %405 = sbr.rel (0) target = $region85
    $region84: #{tpu_custom_call.1} parent=1 // pred_region
      %406 = dma.done [#allocation15], 128
    $region85: #{tpu_custom_call.1} parent=1 // pred_fallthru
      _
    %407 = vsyncpa [#allocation3], 1
    %408 = vsyncpa [#allocation6], 1
    %409 = vsyncpa [#allocation9], 1
    %410 = vsyncpa [#allocation12], 1
    %411 = vsyncpa [#allocation4], 1
    %412 = vsyncpa [#allocation15], 1

</llo_original>
